<compile_context>
chip_gen: v7x
topology: tpu7x:2x2x1
jax: 0.10.0
libtpu: 0.0.40
codegen_flags: <defaults>
</compile_context>

<pallas_src>
import functools

import jax
import jax.numpy as jnp
from jax.experimental import pallas as pl
from jax.experimental.pallas import tpu as pltpu


_PACKED_W = 128   # lane-dense packed output width (hidden | policy | padding)


def _round_up(x, m):
    return ((x + m - 1) // m) * m


# ----------------------------------------------------------------------------
# Fused Pallas kernel: shared_net stand-in + Mean linear + softmax
# ----------------------------------------------------------------------------
def _shared_actor_kernel(state_ref, map_ref, h_ref,
                         w1s_ref, w1m_ref, b1_ref,
                         w2f_ref, w2h_ref, b2_ref,
                         out_ref, *, hidden_dim, action_dim):
    f32 = jnp.float32

    # Shared feature net stand-in: feat = tanh(state@W1s + map@W1m + b1).
    # The map path is bf16 x bf16 with f32 accumulation (dominant operand).
    feat = jnp.tanh(
        jnp.dot(state_ref[...], w1s_ref[...], preferred_element_type=f32)
        + jnp.dot(map_ref[...], w1m_ref[...], preferred_element_type=f32)
        + b1_ref[...]
    )

    # Recurrence fold: z = [feat | h] @ [[wh, wm, 0], [uh, 0, 0]] + [bh|bm|0],
    # evaluated as its two row blocks (one full-vreg add, no lane concat).
    # Lanes [0,H) hold the hidden pre-activation, [H,H+A) the policy logits.
    z = (jnp.dot(feat, w2f_ref[...], preferred_element_type=f32)
         + jnp.dot(h_ref[...], w2h_ref[...], preferred_element_type=f32)
         + b2_ref[...])

    lane = jax.lax.broadcasted_iota(jnp.int32, z.shape, dimension=1)
    is_logit = jnp.logical_and(lane >= hidden_dim, lane < hidden_dim + action_dim)

    # Lane-masked softmax over the A logit lanes (exact; no approx reciprocal).
    big_neg = jnp.float32(-1e30)
    zl = jnp.where(is_logit, z, big_neg)
    zl = zl - jnp.max(zl, axis=-1, keepdims=True)
    e = jnp.exp(zl)                                   # masked lanes -> exactly 0
    p = e / jnp.sum(e, axis=-1, keepdims=True)

    # Lane-dense packed store: tanh branch for the hidden lanes, softmax
    # probabilities elsewhere (lanes >= H+A are zero and discarded outside).
    out_ref[...] = jnp.where(lane < hidden_dim, jnp.tanh(z), p)


# ----------------------------------------------------------------------------
# Wrapper: batch-padded, batch-gridded pallas_call
# ----------------------------------------------------------------------------
def shared_actor_apply(state, map_flat, hidden, params):
    B, state_dim = state.shape
    map_dim = map_flat.shape[1]
    F = params["w1_state"].shape[1]
    H = params["uh"].shape[1]
    A = params["wm"].shape[1]
    OUT_W = params["b2"].shape[1]

    # Pad batch to a sublane multiple; batch blocks of <=256 rows keep the
    # bf16 map tile at <=512 KiB, double-bufferable within every generation's
    # default scoped-VMEM budget (incl. v7x's 64 MiB physical VMEM).
    B_pad = _round_up(max(B, 1), 8)
    block_b = min(B_pad, 256)
    B_pad = _round_up(B_pad, block_b)
    if B_pad != B:
        pad = ((0, B_pad - B), (0, 0))
        state = jnp.pad(state, pad)
        map_flat = jnp.pad(map_flat, pad)
        hidden = jnp.pad(hidden, pad)

    grid = (B_pad // block_b,)
    kernel = functools.partial(_shared_actor_kernel, hidden_dim=H, action_dim=A)

    cost = pl.CostEstimate(
        flops=2 * B_pad * (state_dim * F + map_dim * F + (F + H) * OUT_W),
        transcendentals=B_pad * (F + 2 * OUT_W),
        bytes_accessed=(4 * B_pad * (state_dim + H + OUT_W)
                        + 2 * B_pad * map_dim
                        + 4 * state_dim * F + 2 * map_dim * F
                        + 4 * (F + (F + H + 1) * OUT_W)),
    )

    packed = pl.pallas_call(
        kernel,
        grid=grid,
        in_specs=[
            pl.BlockSpec((block_b, state_dim), lambda i: (i, 0)),
            pl.BlockSpec((block_b, map_dim), lambda i: (i, 0)),
            pl.BlockSpec((block_b, H), lambda i: (i, 0)),
            # Weights: constant block index -> stay resident across grid steps.
            pl.BlockSpec((state_dim, F), lambda i: (0, 0)),
            pl.BlockSpec((map_dim, F), lambda i: (0, 0)),
            pl.BlockSpec((1, F), lambda i: (0, 0)),
            pl.BlockSpec((F, OUT_W), lambda i: (0, 0)),
            pl.BlockSpec((H, OUT_W), lambda i: (0, 0)),
            pl.BlockSpec((1, OUT_W), lambda i: (0, 0)),
        ],
        out_specs=pl.BlockSpec((block_b, OUT_W), lambda i: (i, 0)),
        out_shape=jax.ShapeDtypeStruct((B_pad, OUT_W), jnp.float32),
        compiler_params=pltpu.CompilerParams(
            dimension_semantics=("parallel",)),      # megacore-ready on v7x
        cost_estimate=cost,
    )(state, map_flat, hidden,
      params["w1_state"], params["w1_map"], params["b1"],
      params["w2_feat"], params["w2_hid"], params["b2"])

    hidden_new = packed[:B, :H]
    mean = packed[:B, H:H + A]
    return mean, hidden_new


# ----------------------------------------------------------------------------
# SharedActor params + forward
# ----------------------------------------------------------------------------
def _orthogonal(key, in_dim, out_dim, gain=1.0):
    # Equivalent (up to transpose, which preserves orthogonality) of
    # nn.init.orthogonal_ on the PyTorch (out, in) weight.
    return jax.nn.initializers.orthogonal(scale=gain)(
        key, (in_dim, out_dim), jnp.float32
    )


def init_shared_actor_params(key, state_dim, map_shape, feature_dim, hidden_dim,
                             action_dim):
    c, hgt, wid = map_shape
    map_dim = c * hgt * wid
    assert hidden_dim + action_dim <= _PACKED_W

    k1, k2, k3, k4 = jax.random.split(key, 4)
    w1 = _orthogonal(k1, state_dim + map_dim, feature_dim)
    wh = _orthogonal(k2, feature_dim, hidden_dim)
    uh = _orthogonal(k3, hidden_dim, hidden_dim)
    wm = _orthogonal(k4, feature_dim, action_dim)   # self.Mean weight
    bh = jnp.zeros((1, hidden_dim), jnp.float32)
    bm = jnp.zeros((1, action_dim), jnp.float32)

    # Packed (kernel-facing) forms: lane-aligned 128-wide second-stage weight.
    w2f = jnp.zeros((feature_dim, _PACKED_W), jnp.float32)
    w2f = w2f.at[:, :hidden_dim].set(wh)
    w2f = w2f.at[:, hidden_dim:hidden_dim + action_dim].set(wm)
    w2h = jnp.zeros((hidden_dim, _PACKED_W), jnp.float32).at[:, :hidden_dim].set(uh)
    b2 = jnp.zeros((1, _PACKED_W), jnp.float32)
    b2 = b2.at[:, :hidden_dim].set(bh)
    b2 = b2.at[:, hidden_dim:hidden_dim + action_dim].set(bm)

    return {
        # kernel-facing
        "w1_state": w1[:state_dim],                       # (state_dim, F) f32
        "w1_map": w1[state_dim:].astype(jnp.bfloat16),    # (map_dim, F) bf16
        "b1": jnp.zeros((1, feature_dim), jnp.float32),
        "w2_feat": w2f,                                   # [wh | wm | 0]
        "w2_hid": w2h,                                    # [uh | 0  | 0]
        "b2": b2,                                         # [bh | bm | 0]
        # reference-facing (also used to recover static dims)
        "wh": wh, "uh": uh, "wm": wm, "bh": bh, "bm": bm,
    }


@jax.jit
def shared_actor_forward(params, state, map_, hidden_state):
    """Mirrors SharedActor.forward(state, map, hidden_state) -> (mean, hidden)."""
    B = state.shape[0]
    # NCHW C-order flatten (free reshape); bf16 cast halves the dominant DMA.
    map_flat = map_.reshape(B, -1).astype(jnp.bfloat16)
    return shared_actor_apply(state, map_flat, hidden_state, params)


# Pure-JAX reference for correctness checking (same bf16 map path).
def _reference_forward(params, state, map_, hidden):
    B = state.shape[0]
    map_flat = map_.reshape(B, -1).astype(jnp.bfloat16)
    feat = jnp.tanh(
        state @ params["w1_state"]
        + jnp.dot(map_flat, params["w1_map"], preferred_element_type=jnp.float32)
        + params["b1"])
    h_new = jnp.tanh(feat @ params["wh"] + hidden @ params["uh"] + params["bh"])
    mean = jax.nn.softmax(feat @ params["wm"] + params["bm"], axis=-1)
    return mean, h_new


# ----------------------------------------------------------------------------
# Main
# ----------------------------------------------------------------------------
if __name__ == "__main__":
    B = 2
    C, H_MAP, W_MAP = 4, 16, 16
    STATE_DIM = 16
    FEATURE_DIM = 32     # "input_size" of the Mean head
    HIDDEN_DIM = 32
    ACTION_DIM = 8

    key = jax.random.PRNGKey(0)
    kp, ks, km, kh = jax.random.split(key, 4)

    params = init_shared_actor_params(
        kp, STATE_DIM, (C, H_MAP, W_MAP), FEATURE_DIM, HIDDEN_DIM, ACTION_DIM
    )

    state = jax.random.normal(ks, (B, STATE_DIM), jnp.float32)
    map_in = jax.random.normal(km, (B, C, H_MAP, W_MAP), jnp.float32)
    hidden = jax.random.normal(kh, (B, HIDDEN_DIM), jnp.float32)

    mean, hidden_new = shared_actor_forward(params, state, map_in, hidden)
    jax.block_until_ready((mean, hidden_new))

    assert mean.shape == (B, ACTION_DIM)
    assert hidden_new.shape == (B, HIDDEN_DIM)
    # exact softmax -> rows sum to 1 to f32 precision
    assert bool(jnp.allclose(jnp.sum(mean, axis=-1), 1.0, atol=1e-5))

    # cross-check against the pure-JAX reference
    mean_ref, hidden_ref = _reference_forward(params, state, map_in, hidden)
    assert bool(jnp.allclose(mean, mean_ref, atol=1e-3))
    assert bool(jnp.allclose(hidden_new, hidden_ref, atol=1e-3))

    print("KERNEL_OK")
</pallas_src>

<mosaic_0001>
module attributes {stable_mosaic.version = 11 : i64} {
  func.func @_shared_actor_kernel(%arg0: i32, %arg1: memref<8x16xf32, #tpu.memory_space<vmem>>, %arg2: memref<8x1024xbf16, #tpu.memory_space<vmem>>, %arg3: memref<8x32xf32, #tpu.memory_space<vmem>>, %arg4: memref<16x32xf32, #tpu.memory_space<vmem>>, %arg5: memref<1024x32xbf16, #tpu.memory_space<vmem>>, %arg6: memref<1x32xf32, #tpu.memory_space<vmem>>, %arg7: memref<32x128xf32, #tpu.memory_space<vmem>>, %arg8: memref<32x128xf32, #tpu.memory_space<vmem>>, %arg9: memref<1x128xf32, #tpu.memory_space<vmem>>, %arg10: memref<8x128xf32, #tpu.memory_space<vmem>>) attributes {dimension_semantics = [#tpu.dimension_semantics<parallel>], iteration_bounds = array<i64: 1>, scalar_prefetch = 0 : i64, scratch_operands = 0 : i64, tpu.core_type = #tpu.core_type<tc>, window_params = [{transform_indices = @transform_0, window_bounds = array<i64: 8, 16>}, {transform_indices = @transform_1, window_bounds = array<i64: 8, 1024>}, {transform_indices = @transform_2, window_bounds = array<i64: 8, 32>}, {pipeline_mode = #tpu.pipeline_mode<synchronous>, transform_indices = @transform_3, window_bounds = array<i64: 16, 32>}, {pipeline_mode = #tpu.pipeline_mode<synchronous>, transform_indices = @transform_4, window_bounds = array<i64: 1024, 32>}, {pipeline_mode = #tpu.pipeline_mode<synchronous>, transform_indices = @transform_5, window_bounds = array<i64: 1, 32>}, {pipeline_mode = #tpu.pipeline_mode<synchronous>, transform_indices = @transform_6, window_bounds = array<i64: 32, 128>}, {pipeline_mode = #tpu.pipeline_mode<synchronous>, transform_indices = @transform_7, window_bounds = array<i64: 32, 128>}, {pipeline_mode = #tpu.pipeline_mode<synchronous>, transform_indices = @transform_8, window_bounds = array<i64: 1, 128>}, {transform_indices = @transform_9, window_bounds = array<i64: 8, 128>}]} {
    %c0 = arith.constant 0 : index
    %c0_0 = arith.constant 0 : index
    %0 = vector.load %arg1[%c0, %c0_0] : memref<8x16xf32, #tpu.memory_space<vmem>>, vector<8x16xf32>
    %c0_1 = arith.constant 0 : index
    %c0_2 = arith.constant 0 : index
    %1 = vector.load %arg4[%c0_1, %c0_2] : memref<16x32xf32, #tpu.memory_space<vmem>>, vector<16x32xf32>
    %cst = arith.constant dense<0.000000e+00> : vector<8x32xf32>
    %2 = tpu.matmul %0, %1, %cst {dimension_numbers = #tpu.dot_dimension_numbers<[1], [0], [0], [1], [0, 0, 1, 1], [], []>} : vector<8x16xf32>, vector<16x32xf32>, vector<8x32xf32> -> vector<8x32xf32>
    %c0_3 = arith.constant 0 : index
    %c0_4 = arith.constant 0 : index
    %3 = vector.load %arg2[%c0_3, %c0_4] : memref<8x1024xbf16, #tpu.memory_space<vmem>>, vector<8x1024xbf16>
    %c0_5 = arith.constant 0 : index
    %c0_6 = arith.constant 0 : index
    %4 = vector.load %arg5[%c0_5, %c0_6] : memref<1024x32xbf16, #tpu.memory_space<vmem>>, vector<1024x32xbf16>
    %cst_7 = arith.constant dense<0.000000e+00> : vector<8x32xf32>
    %5 = tpu.matmul %3, %4, %cst_7 {dimension_numbers = #tpu.dot_dimension_numbers<[1], [0], [0], [1], [0, 0, 1, 1], [], []>} : vector<8x1024xbf16>, vector<1024x32xbf16>, vector<8x32xf32> -> vector<8x32xf32>
    %6 = arith.addf %2, %5 : vector<8x32xf32>
    %c0_8 = arith.constant 0 : index
    %c0_9 = arith.constant 0 : index
    %7 = vector.load %arg6[%c0_8, %c0_9] : memref<1x32xf32, #tpu.memory_space<vmem>>, vector<1x32xf32>
    %8 = vector.broadcast %7 : vector<1x32xf32> to vector<8x32xf32>
    %9 = arith.addf %6, %8 : vector<8x32xf32>
    %10 = math.tanh %9 : vector<8x32xf32>
    %c0_10 = arith.constant 0 : index
    %c0_11 = arith.constant 0 : index
    %11 = vector.load %arg7[%c0_10, %c0_11] : memref<32x128xf32, #tpu.memory_space<vmem>>, vector<32x128xf32>
    %cst_12 = arith.constant dense<0.000000e+00> : vector<8x128xf32>
    %12 = tpu.matmul %10, %11, %cst_12 {dimension_numbers = #tpu.dot_dimension_numbers<[1], [0], [0], [1], [0, 0, 1, 1], [], []>} : vector<8x32xf32>, vector<32x128xf32>, vector<8x128xf32> -> vector<8x128xf32>
    %c0_13 = arith.constant 0 : index
    %c0_14 = arith.constant 0 : index
    %13 = vector.load %arg3[%c0_13, %c0_14] : memref<8x32xf32, #tpu.memory_space<vmem>>, vector<8x32xf32>
    %c0_15 = arith.constant 0 : index
    %c0_16 = arith.constant 0 : index
    %14 = vector.load %arg8[%c0_15, %c0_16] : memref<32x128xf32, #tpu.memory_space<vmem>>, vector<32x128xf32>
    %cst_17 = arith.constant dense<0.000000e+00> : vector<8x128xf32>
    %15 = tpu.matmul %13, %14, %cst_17 {dimension_numbers = #tpu.dot_dimension_numbers<[1], [0], [0], [1], [0, 0, 1, 1], [], []>} : vector<8x32xf32>, vector<32x128xf32>, vector<8x128xf32> -> vector<8x128xf32>
    %16 = arith.addf %12, %15 : vector<8x128xf32>
    %c0_18 = arith.constant 0 : index
    %c0_19 = arith.constant 0 : index
    %17 = vector.load %arg9[%c0_18, %c0_19] : memref<1x128xf32, #tpu.memory_space<vmem>>, vector<1x128xf32>
    %18 = vector.broadcast %17 : vector<1x128xf32> to vector<8x128xf32>
    %19 = arith.addf %16, %18 : vector<8x128xf32>
    %20 = tpu.iota {dimensions = array<i32: 1>} : vector<8x128xi32>
    %c32_i32 = arith.constant 32 : i32
    %21 = vector.broadcast %c32_i32 : i32 to vector<8x128xi32>
    %22 = arith.cmpi sge, %20, %21 : vector<8x128xi32>
    %c40_i32 = arith.constant 40 : i32
    %23 = vector.broadcast %c40_i32 : i32 to vector<8x128xi32>
    %24 = arith.cmpi slt, %20, %23 : vector<8x128xi32>
    %25 = arith.andi %22, %24 : vector<8x128xi1>
    %cst_20 = arith.constant -1.000000e+30 : f32
    %26 = vector.broadcast %cst_20 : f32 to vector<8x128xf32>
    %27 = arith.select %25, %19, %26 : vector<8x128xi1>, vector<8x128xf32>
    %cst_21 = arith.constant dense<0xFF800000> : vector<8xf32>
    %28 = vector.multi_reduction <maximumf>, %27, %cst_21 [1] : vector<8x128xf32> to vector<8xf32>
    %29 = vector.shape_cast %28 : vector<8xf32> to vector<8x1xf32>
    %30 = vector.broadcast %29 : vector<8x1xf32> to vector<8x128xf32>
    %31 = arith.subf %27, %30 : vector<8x128xf32>
    %32 = math.exp %31 : vector<8x128xf32>
    %cst_22 = arith.constant dense<0.000000e+00> : vector<8xf32>
    %33 = vector.multi_reduction <add>, %32, %cst_22 [1] : vector<8x128xf32> to vector<8xf32>
    %34 = vector.shape_cast %33 : vector<8xf32> to vector<8x1xf32>
    %35 = vector.broadcast %34 : vector<8x1xf32> to vector<8x128xf32>
    %36 = arith.divf %32, %35 : vector<8x128xf32>
    %c32_i32_23 = arith.constant 32 : i32
    %37 = vector.broadcast %c32_i32_23 : i32 to vector<8x128xi32>
    %38 = arith.cmpi slt, %20, %37 : vector<8x128xi32>
    %39 = math.tanh %19 : vector<8x128xf32>
    %40 = arith.select %38, %39, %36 : vector<8x128xi1>, vector<8x128xf32>
    %c0_24 = arith.constant 0 : index
    %c0_25 = arith.constant 0 : index
    %41 = vector.load %arg10[%c0_24, %c0_25] : memref<8x128xf32, #tpu.memory_space<vmem>>, vector<8x128xf32>
    tpu.vector_store %arg10[%c0_24, %c0_25], %40 {strides = array<i32>} : memref<8x128xf32, #tpu.memory_space<vmem>>, vector<8x128xf32>,
    return
  }
  func.func @transform_0(%arg0: i32) -> (i32, i32) {
    %c0_i32 = arith.constant 0 : i32
    %c0_i32_0 = arith.constant 0 : i32
    return %arg0, %c0_i32 : i32, i32
  }
  func.func @transform_1(%arg0: i32) -> (i32, i32) {
    %c0_i32 = arith.constant 0 : i32
    %c0_i32_0 = arith.constant 0 : i32
    return %arg0, %c0_i32 : i32, i32
  }
  func.func @transform_2(%arg0: i32) -> (i32, i32) {
    %c0_i32 = arith.constant 0 : i32
    %c0_i32_0 = arith.constant 0 : i32
    return %arg0, %c0_i32 : i32, i32
  }
  func.func @transform_3(%arg0: i32) -> (i32, i32) {
    %c0_i32 = arith.constant 0 : i32
    %c0_i32_0 = arith.constant 0 : i32
    %c0_i32_1 = arith.constant 0 : i32
    return %c0_i32, %c0_i32_0 : i32, i32
  }
  func.func @transform_4(%arg0: i32) -> (i32, i32) {
    %c0_i32 = arith.constant 0 : i32
    %c0_i32_0 = arith.constant 0 : i32
    %c0_i32_1 = arith.constant 0 : i32
    return %c0_i32, %c0_i32_0 : i32, i32
  }
  func.func @transform_5(%arg0: i32) -> (i32, i32) {
    %c0_i32 = arith.constant 0 : i32
    %c0_i32_0 = arith.constant 0 : i32
    %c0_i32_1 = arith.constant 0 : i32
    return %c0_i32, %c0_i32_0 : i32, i32
  }
  func.func @transform_6(%arg0: i32) -> (i32, i32) {
    %c0_i32 = arith.constant 0 : i32
    %c0_i32_0 = arith.constant 0 : i32
    %c0_i32_1 = arith.constant 0 : i32
    return %c0_i32, %c0_i32_0 : i32, i32
  }
  func.func @transform_7(%arg0: i32) -> (i32, i32) {
    %c0_i32 = arith.constant 0 : i32
    %c0_i32_0 = arith.constant 0 : i32
    %c0_i32_1 = arith.constant 0 : i32
    return %c0_i32, %c0_i32_0 : i32, i32
  }
  func.func @transform_8(%arg0: i32) -> (i32, i32) {
    %c0_i32 = arith.constant 0 : i32
    %c0_i32_0 = arith.constant 0 : i32
    %c0_i32_1 = arith.constant 0 : i32
    return %c0_i32, %c0_i32_0 : i32, i32
  }
  func.func @transform_9(%arg0: i32) -> (i32, i32) {
    %c0_i32 = arith.constant 0 : i32
    %c0_i32_0 = arith.constant 0 : i32
    return %arg0, %c0_i32 : i32, i32
  }
}

</mosaic_0001>

<llo_original>
// kernel: shared_actor_forward.1
$region0: #{shared_actor_forward.1}
  #allocation0 [shape = 'u32[]', space=smem, size = 0x4, offset = 0x4, fixed_abs, tag = 'smem constant byte address 0x4 - core index']
  #allocation1 [shape = 'u32[144,128]{1,0:T(1,128)}', space=vmem, size = 0x12000, scoped, tag = 'internal scratch']
  %s0 = inlined_call_operand.vmem [shape: f32[8,16], index: 0, kind: input, shape index: {}]
  %s1 = inlined_call_operand.vmem [shape: bf16[8,1024], index: 1, kind: input, shape index: {}]
  %s2 = inlined_call_operand.vmem [shape: f32[8,32], index: 2, kind: input, shape index: {}]
  %s3 = inlined_call_operand.vmem [shape: f32[16,32], index: 3, kind: input, shape index: {}]
  %s4 = inlined_call_operand.vmem [shape: bf16[1024,32], index: 4, kind: input, shape index: {}]
  %s5 = inlined_call_operand.vmem [shape: f32[1,32], index: 5, kind: input, shape index: {}]
  %s6 = inlined_call_operand.vmem [shape: f32[32,128], index: 6, kind: input, shape index: {}]
  %s7 = inlined_call_operand.vmem [shape: f32[32,128], index: 7, kind: input, shape index: {}]
  %s8 = inlined_call_operand.vmem [shape: f32[1,128], index: 8, kind: input, shape index: {}]
  %s9 = inlined_call_operand.vmem [shape: f32[8,128], index: 9, kind: output, shape index: {}]
  %s10 = sld [smem:[#allocation0]]
  $region46: #{shared_actor_forward.1} parent=0
    _
  %s12 = ssub.s32 1, %s10
  %s13 = scalar_select 0, %s12, %s10
  // Predicated region
  $region2: #{shared_actor_forward.1} parent=0 // pred_check
    _
  $region3: #{shared_actor_forward.1} parent=0 // pred_check_branch
    %15 = sbr.rel (0) target = $region5
  $region4: #{shared_actor_forward.1} parent=0 // pred_region
    _
  $region5: #{shared_actor_forward.1} parent=0 // pred_fallthru
    _
  // Predicated region
  $region6: #{shared_actor_forward.1} parent=0 // pred_check
    _
  $region7: #{shared_actor_forward.1} parent=0 // pred_check_branch
    %17 = sbr.rel (0) target = $region9
  $region8: #{shared_actor_forward.1} parent=0 // pred_region
    _
  $region9: #{shared_actor_forward.1} parent=0 // pred_fallthru
    _
  // Predicated region
  $region10: #{shared_actor_forward.1} parent=0 // pred_check
    _
  $region11: #{shared_actor_forward.1} parent=0 // pred_check_branch
    %19 = sbr.rel (0) target = $region13
  $region12: #{shared_actor_forward.1} parent=0 // pred_region
    _
  $region13: #{shared_actor_forward.1} parent=0 // pred_fallthru
    _
  // Predicated region
  $region14: #{shared_actor_forward.1} parent=0 // pred_check
    _
  $region15: #{shared_actor_forward.1} parent=0 // pred_check_branch
    %21 = sbr.rel (0) target = $region17
  $region16: #{shared_actor_forward.1} parent=0 // pred_region
    _
  $region17: #{shared_actor_forward.1} parent=0 // pred_fallthru
    _
  // Predicated region
  $region18: #{shared_actor_forward.1} parent=0 // pred_check
    _
  $region19: #{shared_actor_forward.1} parent=0 // pred_check_branch
    %23 = sbr.rel (0) target = $region21
  $region20: #{shared_actor_forward.1} parent=0 // pred_region
    _
  $region21: #{shared_actor_forward.1} parent=0 // pred_fallthru
    _
  // Predicated region
  $region22: #{shared_actor_forward.1} parent=0 // pred_check
    _
  $region23: #{shared_actor_forward.1} parent=0 // pred_check_branch
    %25 = sbr.rel (0) target = $region25
  $region24: #{shared_actor_forward.1} parent=0 // pred_region
    _
  $region25: #{shared_actor_forward.1} parent=0 // pred_fallthru
    _
  // Predicated region
  $region26: #{shared_actor_forward.1} parent=0 // pred_check
    _
  $region27: #{shared_actor_forward.1} parent=0 // pred_check_branch
    %27 = sbr.rel (0) target = $region29
  $region28: #{shared_actor_forward.1} parent=0 // pred_region
    _
  $region29: #{shared_actor_forward.1} parent=0 // pred_fallthru
    _
  // Predicated region
  $region30: #{shared_actor_forward.1} parent=0 // pred_check
    _
  $region31: #{shared_actor_forward.1} parent=0 // pred_check_branch
    %29 = sbr.rel (0) target = $region33
  $region32: #{shared_actor_forward.1} parent=0 // pred_region
    _
  $region33: #{shared_actor_forward.1} parent=0 // pred_fallthru
    _
  // Predicated region
  $region34: #{shared_actor_forward.1} parent=0 // pred_check
    _
  $region35: #{shared_actor_forward.1} parent=0 // pred_check_branch
    %31 = sbr.rel (0) target = $region37
  $region36: #{shared_actor_forward.1} parent=0 // pred_region
    _
  $region37: #{shared_actor_forward.1} parent=0 // pred_fallthru
    _
  %v33 = vld [vmem:[%s0] sm:$0xff]
  %v34 = vld [vmem:[%s3] sm:$0xff]
  %v35 = vld [vmem:[%s3 + $0x8] sm:$0xff]
  %v36 = vld [vmem:[%s1] sm:$0xff]
  %v37 = vld [vmem:[%s1 + $0x8] sm:$0xff]
  %v38 = vld [vmem:[%s1 + $0x10] sm:$0xff]
  %v39 = vld [vmem:[%s1 + $0x18] sm:$0xff]
  %v40 = vld [vmem:[%s4] sm:$0xf]
  %v41 = vld [vmem:[%s4 + $0x4] sm:$0xf]
  %v42 = vld [vmem:[%s4 + $0x8] sm:$0xf]
  %v43 = vld [vmem:[%s4 + $0xc] sm:$0xf]
  %v44 = vld [vmem:[%s4 + $0x10] sm:$0xf]
  %v45 = vld [vmem:[%s4 + $0x14] sm:$0xf]
  %v46 = vld [vmem:[%s4 + $0x18] sm:$0xf]
  %v47 = vld [vmem:[%s4 + $0x1c] sm:$0xf]
  %v48 = vld [vmem:[%s4 + $0x20] sm:$0xf]
  %v49 = vld [vmem:[%s4 + $0x24] sm:$0xf]
  %v50 = vld [vmem:[%s4 + $0x28] sm:$0xf]
  %v51 = vld [vmem:[%s4 + $0x2c] sm:$0xf]
  %v52 = vld [vmem:[%s4 + $0x30] sm:$0xf]
  %v53 = vld [vmem:[%s4 + $0x34] sm:$0xf]
  %v54 = vld [vmem:[%s4 + $0x38] sm:$0xf]
  %v55 = vld [vmem:[%s4 + $0x3c] sm:$0xf]
  %v56 = vld [vmem:[%s4 + $0x40] sm:$0xf]
  %v57 = vld [vmem:[%s4 + $0x44] sm:$0xf]
  %v58 = vld [vmem:[%s4 + $0x48] sm:$0xf]
  %v59 = vld [vmem:[%s4 + $0x4c] sm:$0xf]
  %v60 = vld [vmem:[%s4 + $0x50] sm:$0xf]
  %v61 = vld [vmem:[%s4 + $0x54] sm:$0xf]
  %v62 = vld [vmem:[%s4 + $0x58] sm:$0xf]
  %v63 = vld [vmem:[%s4 + $0x5c] sm:$0xf]
  %v64 = vld [vmem:[%s4 + $0x60] sm:$0xf]
  %v65 = vld [vmem:[%s4 + $0x64] sm:$0xf]
  %v66 = vld [vmem:[%s4 + $0x68] sm:$0xf]
  %v67 = vld [vmem:[%s4 + $0x6c] sm:$0xf]
  %v68 = vld [vmem:[%s4 + $0x70] sm:$0xf]
  %v69 = vld [vmem:[%s4 + $0x74] sm:$0xf]
  %v70 = vld [vmem:[%s4 + $0x78] sm:$0xf]
  %v71 = vld [vmem:[%s4 + $0x7c] sm:$0xf]
  %v72 = vld [vmem:[%s4 + $0x80] sm:$0xf]
  %v73 = vld [vmem:[%s4 + $0x84] sm:$0xf]
  %v74 = vld [vmem:[%s4 + $0x88] sm:$0xf]
  %v75 = vld [vmem:[%s4 + $0x8c] sm:$0xf]
  %v76 = vld [vmem:[%s4 + $0x90] sm:$0xf]
  %v77 = vld [vmem:[%s4 + $0x94] sm:$0xf]
  %v78 = vld [vmem:[%s4 + $0x98] sm:$0xf]
  %v79 = vld [vmem:[%s4 + $0x9c] sm:$0xf]
  %v80 = vld [vmem:[%s4 + $0xa0] sm:$0xf]
  %v81 = vld [vmem:[%s4 + $0xa4] sm:$0xf]
  %v82 = vld [vmem:[%s4 + $0xa8] sm:$0xf]
  %v83 = vld [vmem:[%s4 + $0xac] sm:$0xf]
  %v84 = vld [vmem:[%s4 + $0xb0] sm:$0xf]
  %v85 = vld [vmem:[%s4 + $0xb4] sm:$0xf]
  %v86 = vld [vmem:[%s4 + $0xb8] sm:$0xf]
  %v87 = vld [vmem:[%s4 + $0xbc] sm:$0xf]
  %v88 = vld [vmem:[%s4 + $0xc0] sm:$0xf]
  %v89 = vld [vmem:[%s4 + $0xc4] sm:$0xf]
  %v90 = vld [vmem:[%s4 + $0xc8] sm:$0xf]
  %v91 = vld [vmem:[%s4 + $0xcc] sm:$0xf]
  %v92 = vld [vmem:[%s4 + $0xd0] sm:$0xf]
  %v93 = vld [vmem:[%s4 + $0xd4] sm:$0xf]
  %v94 = vld [vmem:[%s4 + $0xd8] sm:$0xf]
  %v95 = vld [vmem:[%s4 + $0xdc] sm:$0xf]
  %v96 = vld [vmem:[%s4 + $0xe0] sm:$0xf]
  %v97 = vld [vmem:[%s4 + $0xe4] sm:$0xf]
  %v98 = vld [vmem:[%s4 + $0xe8] sm:$0xf]
  %v99 = vld [vmem:[%s4 + $0xec] sm:$0xf]
  %v100 = vld [vmem:[%s4 + $0xf0] sm:$0xf]
  %v101 = vld [vmem:[%s4 + $0xf4] sm:$0xf]
  %v102 = vld [vmem:[%s4 + $0xf8] sm:$0xf]
  %v103 = vld [vmem:[%s4 + $0xfc] sm:$0xf]
  %v104 = vld [vmem:[%s4 + $0x100] sm:$0xf]
  %v105 = vld [vmem:[%s4 + $0x104] sm:$0xf]
  %v106 = vld [vmem:[%s4 + $0x108] sm:$0xf]
  %v107 = vld [vmem:[%s4 + $0x10c] sm:$0xf]
  %v108 = vld [vmem:[%s4 + $0x110] sm:$0xf]
  %v109 = vld [vmem:[%s4 + $0x114] sm:$0xf]
  %v110 = vld [vmem:[%s4 + $0x118] sm:$0xf]
  %v111 = vld [vmem:[%s4 + $0x11c] sm:$0xf]
  %v112 = vld [vmem:[%s4 + $0x120] sm:$0xf]
  %v113 = vld [vmem:[%s4 + $0x124] sm:$0xf]
  %v114 = vld [vmem:[%s4 + $0x128] sm:$0xf]
  %v115 = vld [vmem:[%s4 + $0x12c] sm:$0xf]
  %v116 = vld [vmem:[%s4 + $0x130] sm:$0xf]
  %v117 = vld [vmem:[%s4 + $0x134] sm:$0xf]
  %v118 = vld [vmem:[%s4 + $0x138] sm:$0xf]
  %v119 = vld [vmem:[%s4 + $0x13c] sm:$0xf]
  %v120 = vld [vmem:[%s4 + $0x140] sm:$0xf]
  %v121 = vld [vmem:[%s4 + $0x144] sm:$0xf]
  %v122 = vld [vmem:[%s4 + $0x148] sm:$0xf]
  %v123 = vld [vmem:[%s4 + $0x14c] sm:$0xf]
  %v124 = vld [vmem:[%s4 + $0x150] sm:$0xf]
  %v125 = vld [vmem:[%s4 + $0x154] sm:$0xf]
  %v126 = vld [vmem:[%s4 + $0x158] sm:$0xf]
  %v127 = vld [vmem:[%s4 + $0x15c] sm:$0xf]
  %v128 = vld [vmem:[%s4 + $0x160] sm:$0xf]
  %v129 = vld [vmem:[%s4 + $0x164] sm:$0xf]
  %v130 = vld [vmem:[%s4 + $0x168] sm:$0xf]
  %v131 = vld [vmem:[%s4 + $0x16c] sm:$0xf]
  %v132 = vld [vmem:[%s4 + $0x170] sm:$0xf]
  %v133 = vld [vmem:[%s4 + $0x174] sm:$0xf]
  %v134 = vld [vmem:[%s4 + $0x178] sm:$0xf]
  %v135 = vld [vmem:[%s4 + $0x17c] sm:$0xf]
  %v136 = vld [vmem:[%s4 + $0x180] sm:$0xf]
  %v137 = vld [vmem:[%s4 + $0x184] sm:$0xf]
  %v138 = vld [vmem:[%s4 + $0x188] sm:$0xf]
  %v139 = vld [vmem:[%s4 + $0x18c] sm:$0xf]
  %v140 = vld [vmem:[%s4 + $0x190] sm:$0xf]
  %v141 = vld [vmem:[%s4 + $0x194] sm:$0xf]
  %v142 = vld [vmem:[%s4 + $0x198] sm:$0xf]
  %v143 = vld [vmem:[%s4 + $0x19c] sm:$0xf]
  %v144 = vld [vmem:[%s4 + $0x1a0] sm:$0xf]
  %v145 = vld [vmem:[%s4 + $0x1a4] sm:$0xf]
  %v146 = vld [vmem:[%s4 + $0x1a8] sm:$0xf]
  %v147 = vld [vmem:[%s4 + $0x1ac] sm:$0xf]
  %v148 = vld [vmem:[%s4 + $0x1b0] sm:$0xf]
  %v149 = vld [vmem:[%s4 + $0x1b4] sm:$0xf]
  %v150 = vld [vmem:[%s4 + $0x1b8] sm:$0xf]
  %v151 = vld [vmem:[%s4 + $0x1bc] sm:$0xf]
  %v152 = vld [vmem:[%s4 + $0x1c0] sm:$0xf]
  %v153 = vld [vmem:[%s4 + $0x1c4] sm:$0xf]
  %v154 = vld [vmem:[%s4 + $0x1c8] sm:$0xf]
  %v155 = vld [vmem:[%s4 + $0x1cc] sm:$0xf]
  %v156 = vld [vmem:[%s4 + $0x1d0] sm:$0xf]
  %v157 = vld [vmem:[%s4 + $0x1d4] sm:$0xf]
  %v158 = vld [vmem:[%s4 + $0x1d8] sm:$0xf]
  %v159 = vld [vmem:[%s4 + $0x1dc] sm:$0xf]
  %v160 = vld [vmem:[%s4 + $0x1e0] sm:$0xf]
  %v161 = vld [vmem:[%s4 + $0x1e4] sm:$0xf]
  %v162 = vld [vmem:[%s4 + $0x1e8] sm:$0xf]
  %v163 = vld [vmem:[%s4 + $0x1ec] sm:$0xf]
  %v164 = vld [vmem:[%s4 + $0x1f0] sm:$0xf]
  %v165 = vld [vmem:[%s4 + $0x1f4] sm:$0xf]
  %v166 = vld [vmem:[%s4 + $0x1f8] sm:$0xf]
  %v167 = vld [vmem:[%s4 + $0x1fc] sm:$0xf]
  %v172 = vunpack.c.l.b16 %v36
  %v173 = vunpack.c.h.b16 %v36
  %v174 = vunpack.c.l.b16 %v37
  %v175 = vunpack.c.h.b16 %v37
  %v176 = vunpack.c.l.b16 %v38
  %v177 = vunpack.c.h.b16 %v38
  %v178 = vunpack.c.l.b16 %v39
  %v179 = vunpack.c.h.b16 %v39
  %v180 = vpack.c.b16 %v172, %v172
  %v181 = vpack.c.b16 %v173, %v173
  %v182 = vpack.c.b16 %v174, %v174
  %v183 = vpack.c.b16 %v175, %v175
  %v184 = vpack.c.b16 %v176, %v176
  %v185 = vpack.c.b16 %v177, %v177
  %v186 = vpack.c.b16 %v178, %v178
  %v187 = vpack.c.b16 %v179, %v179
  %v324 = vunpack.c.l.b16 %v40
  %v325 = vunpack.c.l.b16 %v41
  %v326 = vunpack.c.l.b16 %v42
  %v327 = vunpack.c.l.b16 %v43
  %v328 = vunpack.c.l.b16 %v44
  %v329 = vunpack.c.l.b16 %v45
  %v330 = vunpack.c.l.b16 %v46
  %v331 = vunpack.c.l.b16 %v47
  %v332 = vunpack.c.l.b16 %v48
  %v333 = vunpack.c.l.b16 %v49
  %v334 = vunpack.c.l.b16 %v50
  %v335 = vunpack.c.l.b16 %v51
  %v336 = vunpack.c.l.b16 %v52
  %v337 = vunpack.c.l.b16 %v53
  %v338 = vunpack.c.l.b16 %v54
  %v339 = vunpack.c.l.b16 %v55
  %v340 = vunpack.c.l.b16 %v56
  %v341 = vunpack.c.l.b16 %v57
  %v342 = vunpack.c.l.b16 %v58
  %v343 = vunpack.c.l.b16 %v59
  %v344 = vunpack.c.l.b16 %v60
  %v345 = vunpack.c.l.b16 %v61
  %v346 = vunpack.c.l.b16 %v62
  %v347 = vunpack.c.l.b16 %v63
  %v348 = vunpack.c.l.b16 %v64
  %v349 = vunpack.c.l.b16 %v65
  %v350 = vunpack.c.l.b16 %v66
  %v351 = vunpack.c.l.b16 %v67
  %v352 = vunpack.c.l.b16 %v68
  %v353 = vunpack.c.l.b16 %v69
  %v354 = vunpack.c.l.b16 %v70
  %v355 = vunpack.c.l.b16 %v71
  %v356 = vunpack.c.l.b16 %v72
  %v357 = vunpack.c.l.b16 %v73
  %v358 = vunpack.c.l.b16 %v74
  %v359 = vunpack.c.l.b16 %v75
  %v360 = vunpack.c.l.b16 %v76
  %v361 = vunpack.c.l.b16 %v77
  %v362 = vunpack.c.l.b16 %v78
  %v363 = vunpack.c.l.b16 %v79
  %v364 = vunpack.c.l.b16 %v80
  %v365 = vunpack.c.l.b16 %v81
  %v366 = vunpack.c.l.b16 %v82
  %v367 = vunpack.c.l.b16 %v83
  %v368 = vunpack.c.l.b16 %v84
  %v369 = vunpack.c.l.b16 %v85
  %v370 = vunpack.c.l.b16 %v86
  %v371 = vunpack.c.l.b16 %v87
  %v372 = vunpack.c.l.b16 %v88
  %v373 = vunpack.c.l.b16 %v89
  %v374 = vunpack.c.l.b16 %v90
  %v375 = vunpack.c.l.b16 %v91
  %v376 = vunpack.c.l.b16 %v92
  %v377 = vunpack.c.l.b16 %v93
  %v378 = vunpack.c.l.b16 %v94
  %v379 = vunpack.c.l.b16 %v95
  %v380 = vunpack.c.l.b16 %v96
  %v381 = vunpack.c.l.b16 %v97
  %v382 = vunpack.c.l.b16 %v98
  %v383 = vunpack.c.l.b16 %v99
  %v384 = vunpack.c.l.b16 %v100
  %v385 = vunpack.c.l.b16 %v101
  %v386 = vunpack.c.l.b16 %v102
  %v387 = vunpack.c.l.b16 %v103
  %v388 = vunpack.c.l.b16 %v104
  %v389 = vunpack.c.l.b16 %v105
  %v390 = vunpack.c.l.b16 %v106
  %v391 = vunpack.c.l.b16 %v107
  %v392 = vunpack.c.l.b16 %v108
  %v393 = vunpack.c.l.b16 %v109
  %v394 = vunpack.c.l.b16 %v110
  %v395 = vunpack.c.l.b16 %v111
  %v396 = vunpack.c.l.b16 %v112
  %v397 = vunpack.c.l.b16 %v113
  %v398 = vunpack.c.l.b16 %v114
  %v399 = vunpack.c.l.b16 %v115
  %v400 = vunpack.c.l.b16 %v116
  %v401 = vunpack.c.l.b16 %v117
  %v402 = vunpack.c.l.b16 %v118
  %v403 = vunpack.c.l.b16 %v119
  %v404 = vunpack.c.l.b16 %v120
  %v405 = vunpack.c.l.b16 %v121
  %v406 = vunpack.c.l.b16 %v122
  %v407 = vunpack.c.l.b16 %v123
  %v408 = vunpack.c.l.b16 %v124
  %v409 = vunpack.c.l.b16 %v125
  %v410 = vunpack.c.l.b16 %v126
  %v411 = vunpack.c.l.b16 %v127
  %v412 = vunpack.c.l.b16 %v128
  %v413 = vunpack.c.l.b16 %v129
  %v414 = vunpack.c.l.b16 %v130
  %v415 = vunpack.c.l.b16 %v131
  %v416 = vunpack.c.l.b16 %v132
  %v417 = vunpack.c.l.b16 %v133
  %v418 = vunpack.c.l.b16 %v134
  %v419 = vunpack.c.l.b16 %v135
  %v420 = vunpack.c.l.b16 %v136
  %v421 = vunpack.c.l.b16 %v137
  %v422 = vunpack.c.l.b16 %v138
  %v423 = vunpack.c.l.b16 %v139
  %v424 = vunpack.c.l.b16 %v140
  %v425 = vunpack.c.l.b16 %v141
  %v426 = vunpack.c.l.b16 %v142
  %v427 = vunpack.c.l.b16 %v143
  %v428 = vunpack.c.l.b16 %v144
  %v429 = vunpack.c.l.b16 %v145
  %v430 = vunpack.c.l.b16 %v146
  %v431 = vunpack.c.l.b16 %v147
  %v432 = vunpack.c.l.b16 %v148
  %v433 = vunpack.c.l.b16 %v149
  %v434 = vunpack.c.l.b16 %v150
  %v435 = vunpack.c.l.b16 %v151
  %v436 = vunpack.c.l.b16 %v152
  %v437 = vunpack.c.l.b16 %v153
  %v438 = vunpack.c.l.b16 %v154
  %v439 = vunpack.c.l.b16 %v155
  %v440 = vunpack.c.l.b16 %v156
  %v441 = vunpack.c.l.b16 %v157
  %v442 = vunpack.c.l.b16 %v158
  %v443 = vunpack.c.l.b16 %v159
  %v444 = vunpack.c.l.b16 %v160
  %v445 = vunpack.c.l.b16 %v161
  %v446 = vunpack.c.l.b16 %v162
  %v447 = vunpack.c.l.b16 %v163
  %v448 = vunpack.c.l.b16 %v164
  %v449 = vunpack.c.l.b16 %v165
  %v450 = vunpack.c.l.b16 %v166
  %v451 = vunpack.c.l.b16 %v167
  %v452 = vpack.c.b16 %v325, %v324
  %v453 = vpack.c.b16 %v327, %v326
  %v454 = vpack.c.b16 %v329, %v328
  %v455 = vpack.c.b16 %v331, %v330
  %v456 = vpack.c.b16 %v333, %v332
  %v457 = vpack.c.b16 %v335, %v334
  %v458 = vpack.c.b16 %v337, %v336
  %v459 = vpack.c.b16 %v339, %v338
  %v460 = vpack.c.b16 %v341, %v340
  %v461 = vpack.c.b16 %v343, %v342
  %v462 = vpack.c.b16 %v345, %v344
  %v463 = vpack.c.b16 %v347, %v346
  %v464 = vpack.c.b16 %v349, %v348
  %v465 = vpack.c.b16 %v351, %v350
  %v466 = vpack.c.b16 %v353, %v352
  %v467 = vpack.c.b16 %v355, %v354
  %v468 = vpack.c.b16 %v357, %v356
  %v469 = vpack.c.b16 %v359, %v358
  %v470 = vpack.c.b16 %v361, %v360
  %v471 = vpack.c.b16 %v363, %v362
  %v472 = vpack.c.b16 %v365, %v364
  %v473 = vpack.c.b16 %v367, %v366
  %v474 = vpack.c.b16 %v369, %v368
  %v475 = vpack.c.b16 %v371, %v370
  %v476 = vpack.c.b16 %v373, %v372
  %v477 = vpack.c.b16 %v375, %v374
  %v478 = vpack.c.b16 %v377, %v376
  %v479 = vpack.c.b16 %v379, %v378
  %v480 = vpack.c.b16 %v381, %v380
  %v481 = vpack.c.b16 %v383, %v382
  %v482 = vpack.c.b16 %v385, %v384
  %v483 = vpack.c.b16 %v387, %v386
  %v484 = vpack.c.b16 %v389, %v388
  %v485 = vpack.c.b16 %v391, %v390
  %v486 = vpack.c.b16 %v393, %v392
  %v487 = vpack.c.b16 %v395, %v394
  %v488 = vpack.c.b16 %v397, %v396
  %v489 = vpack.c.b16 %v399, %v398
  %v490 = vpack.c.b16 %v401, %v400
  %v491 = vpack.c.b16 %v403, %v402
  %v492 = vpack.c.b16 %v405, %v404
  %v493 = vpack.c.b16 %v407, %v406
  %v494 = vpack.c.b16 %v409, %v408
  %v495 = vpack.c.b16 %v411, %v410
  %v496 = vpack.c.b16 %v413, %v412
  %v497 = vpack.c.b16 %v415, %v414
  %v498 = vpack.c.b16 %v417, %v416
  %v499 = vpack.c.b16 %v419, %v418
  %v500 = vpack.c.b16 %v421, %v420
  %v501 = vpack.c.b16 %v423, %v422
  %v502 = vpack.c.b16 %v425, %v424
  %v503 = vpack.c.b16 %v427, %v426
  %v504 = vpack.c.b16 %v429, %v428
  %v505 = vpack.c.b16 %v431, %v430
  %v506 = vpack.c.b16 %v433, %v432
  %v507 = vpack.c.b16 %v435, %v434
  %v508 = vpack.c.b16 %v437, %v436
  %v509 = vpack.c.b16 %v439, %v438
  %v510 = vpack.c.b16 %v441, %v440
  %v511 = vpack.c.b16 %v443, %v442
  %v512 = vpack.c.b16 %v445, %v444
  %v513 = vpack.c.b16 %v447, %v446
  %v514 = vpack.c.b16 %v449, %v448
  %v515 = vpack.c.b16 %v451, %v450
  %580 = vmatprep.subr.bf16.mxu0 0
  %581 = vmatpush1.bf16.msra.mxu0 %v452
  %582 = vmatprep.subr.bf16.mxu0 0
  %583 = vmatpush1.bf16.msra.mxu0 %v453
  %584 = vmatprep.subr.bf16.mxu0 0
  %585 = vmatpush1.bf16.msra.mxu0 %v454
  %586 = vmatprep.subr.bf16.mxu0 0
  %587 = vmatpush1.bf16.msra.mxu0 %v455
  %588 = vmatprep.subr.bf16.mxu0 0
  %589 = vmatpush1.bf16.msra.mxu0 %v456
  %590 = vmatprep.subr.bf16.mxu0 0
  %591 = vmatpush1.bf16.msra.mxu0 %v457
  %592 = vmatprep.subr.bf16.mxu0 0
  %593 = vmatpush1.bf16.msra.mxu0 %v458
  %594 = vmatprep.subr.bf16.mxu0 0
  %595 = vmatpush1.bf16.msra.mxu0 %v459
  %596 = vmatprep.subr.bf16.mxu0 0
  %597 = vmatpush1.bf16.msra.mxu0 %v460
  %598 = vmatprep.subr.bf16.mxu0 0
  %599 = vmatpush1.bf16.msra.mxu0 %v461
  %600 = vmatprep.subr.bf16.mxu0 0
  %601 = vmatpush1.bf16.msra.mxu0 %v462
  %602 = vmatprep.subr.bf16.mxu0 0
  %603 = vmatpush1.bf16.msra.mxu0 %v463
  %604 = vmatprep.subr.bf16.mxu0 0
  %605 = vmatpush1.bf16.msra.mxu0 %v464
  %606 = vmatprep.subr.bf16.mxu0 0
  %607 = vmatpush1.bf16.msra.mxu0 %v465
  %608 = vmatprep.subr.bf16.mxu0 0
  %609 = vmatpush1.bf16.msra.mxu0 %v466
  %610 = vmatprep.subr.bf16.mxu0 0
  %611 = vmatpush1.bf16.msra.mxu0 %v467
  %612 = vmatprep.mubr.bf16.mxu0 %v181
  %613 = vmatmul.mubr.bf16.gmra.mrb[0].mxu0 %v180
  %v614 = vpop.f32.mrb[0].mxu0
  %v615 = vadd.f32 0.0, %v614
  %v616 = vpop.f32.mrb[0].mxu0
  %v617 = vpop.f32.mrb[0].mxu0
  %v618 = vpop.f32.mrb[0].mxu0
  %619 = vdwg.mxu0
  %620 = vmatprep.subr.bf16.mxu0 0
  %621 = vmatpush1.bf16.msra.mxu0 %v468
  %622 = vmatprep.subr.bf16.mxu0 0
  %623 = vmatpush1.bf16.msra.mxu0 %v469
  %624 = vmatprep.subr.bf16.mxu0 0
  %625 = vmatpush1.bf16.msra.mxu0 %v470
  %626 = vmatprep.subr.bf16.mxu0 0
  %627 = vmatpush1.bf16.msra.mxu0 %v471
  %628 = vmatprep.subr.bf16.mxu0 0
  %629 = vmatpush1.bf16.msra.mxu0 %v472
  %630 = vmatprep.subr.bf16.mxu0 0
  %631 = vmatpush1.bf16.msra.mxu0 %v473
  %632 = vmatprep.subr.bf16.mxu0 0
  %633 = vmatpush1.bf16.msra.mxu0 %v474
  %634 = vmatprep.subr.bf16.mxu0 0
  %635 = vmatpush1.bf16.msra.mxu0 %v475
  %636 = vmatprep.subr.bf16.mxu0 0
  %637 = vmatpush1.bf16.msra.mxu0 %v476
  %638 = vmatprep.subr.bf16.mxu0 0
  %639 = vmatpush1.bf16.msra.mxu0 %v477
  %640 = vmatprep.subr.bf16.mxu0 0
  %641 = vmatpush1.bf16.msra.mxu0 %v478
  %642 = vmatprep.subr.bf16.mxu0 0
  %643 = vmatpush1.bf16.msra.mxu0 %v479
  %644 = vmatprep.subr.bf16.mxu0 0
  %645 = vmatpush1.bf16.msra.mxu0 %v480
  %646 = vmatprep.subr.bf16.mxu0 0
  %647 = vmatpush1.bf16.msra.mxu0 %v481
  %648 = vmatprep.subr.bf16.mxu0 0
  %649 = vmatpush1.bf16.msra.mxu0 %v482
  %650 = vmatprep.subr.bf16.mxu0 0
  %651 = vmatpush1.bf16.msra.mxu0 %v483
  %652 = vmatprep.mubr.bf16.mxu0 %v183
  %653 = vmatmul.mubr.bf16.gmra.mrb[0].mxu0 %v182
  %v654 = vpop.f32.mrb[0].mxu0
  %v655 = vadd.f32 %v615, %v654
  %v656 = vpop.f32.mrb[0].mxu0
  %v657 = vpop.f32.mrb[0].mxu0
  %v658 = vpop.f32.mrb[0].mxu0
  %659 = vdwg.mxu0
  %660 = vmatprep.subr.bf16.mxu0 0
  %661 = vmatpush1.bf16.msra.mxu0 %v484
  %662 = vmatprep.subr.bf16.mxu0 0
  %663 = vmatpush1.bf16.msra.mxu0 %v485
  %664 = vmatprep.subr.bf16.mxu0 0
  %665 = vmatpush1.bf16.msra.mxu0 %v486
  %666 = vmatprep.subr.bf16.mxu0 0
  %667 = vmatpush1.bf16.msra.mxu0 %v487
  %668 = vmatprep.subr.bf16.mxu0 0
  %669 = vmatpush1.bf16.msra.mxu0 %v488
  %670 = vmatprep.subr.bf16.mxu0 0
  %671 = vmatpush1.bf16.msra.mxu0 %v489
  %672 = vmatprep.subr.bf16.mxu0 0
  %673 = vmatpush1.bf16.msra.mxu0 %v490
  %674 = vmatprep.subr.bf16.mxu0 0
  %675 = vmatpush1.bf16.msra.mxu0 %v491
  %676 = vmatprep.subr.bf16.mxu0 0
  %677 = vmatpush1.bf16.msra.mxu0 %v492
  %678 = vmatprep.subr.bf16.mxu0 0
  %679 = vmatpush1.bf16.msra.mxu0 %v493
  %680 = vmatprep.subr.bf16.mxu0 0
  %681 = vmatpush1.bf16.msra.mxu0 %v494
  %682 = vmatprep.subr.bf16.mxu0 0
  %683 = vmatpush1.bf16.msra.mxu0 %v495
  %684 = vmatprep.subr.bf16.mxu0 0
  %685 = vmatpush1.bf16.msra.mxu0 %v496
  %686 = vmatprep.subr.bf16.mxu0 0
  %687 = vmatpush1.bf16.msra.mxu0 %v497
  %688 = vmatprep.subr.bf16.mxu0 0
  %689 = vmatpush1.bf16.msra.mxu0 %v498
  %690 = vmatprep.subr.bf16.mxu0 0
  %691 = vmatpush1.bf16.msra.mxu0 %v499
  %692 = vmatprep.mubr.bf16.mxu0 %v185
  %693 = vmatmul.mubr.bf16.gmra.mrb[0].mxu0 %v184
  %v694 = vpop.f32.mrb[0].mxu0
  %v695 = vadd.f32 %v655, %v694
  %v696 = vpop.f32.mrb[0].mxu0
  %v697 = vpop.f32.mrb[0].mxu0
  %v698 = vpop.f32.mrb[0].mxu0
  %699 = vdwg.mxu0
  %700 = vmatprep.subr.bf16.mxu0 0
  %701 = vmatpush1.bf16.msra.mxu0 %v500
  %702 = vmatprep.subr.bf16.mxu0 0
  %703 = vmatpush1.bf16.msra.mxu0 %v501
  %704 = vmatprep.subr.bf16.mxu0 0
  %705 = vmatpush1.bf16.msra.mxu0 %v502
  %706 = vmatprep.subr.bf16.mxu0 0
  %707 = vmatpush1.bf16.msra.mxu0 %v503
  %708 = vmatprep.subr.bf16.mxu0 0
  %709 = vmatpush1.bf16.msra.mxu0 %v504
  %710 = vmatprep.subr.bf16.mxu0 0
  %711 = vmatpush1.bf16.msra.mxu0 %v505
  %712 = vmatprep.subr.bf16.mxu0 0
  %713 = vmatpush1.bf16.msra.mxu0 %v506
  %714 = vmatprep.subr.bf16.mxu0 0
  %715 = vmatpush1.bf16.msra.mxu0 %v507
  %716 = vmatprep.subr.bf16.mxu0 0
  %717 = vmatpush1.bf16.msra.mxu0 %v508
  %718 = vmatprep.subr.bf16.mxu0 0
  %719 = vmatpush1.bf16.msra.mxu0 %v509
  %720 = vmatprep.subr.bf16.mxu0 0
  %721 = vmatpush1.bf16.msra.mxu0 %v510
  %722 = vmatprep.subr.bf16.mxu0 0
  %723 = vmatpush1.bf16.msra.mxu0 %v511
  %724 = vmatprep.subr.bf16.mxu0 0
  %725 = vmatpush1.bf16.msra.mxu0 %v512
  %726 = vmatprep.subr.bf16.mxu0 0
  %727 = vmatpush1.bf16.msra.mxu0 %v513
  %728 = vmatprep.subr.bf16.mxu0 0
  %729 = vmatpush1.bf16.msra.mxu0 %v514
  %730 = vmatprep.subr.bf16.mxu0 0
  %731 = vmatpush1.bf16.msra.mxu0 %v515
  %732 = vmatprep.mubr.bf16.mxu0 %v187
  %733 = vmatmul.mubr.bf16.gmra.mrb[0].mxu0 %v186
  %v734 = vpop.f32.mrb[0].mxu0
  %v735 = vadd.f32 %v695, %v734
  %v736 = vpop.f32.mrb[0].mxu0
  %v737 = vpop.f32.mrb[0].mxu0
  %v738 = vpop.f32.mrb[0].mxu0
  %739 = vdwg.mxu0
  %vm740 = vcmask 130048
  %v742 = vsel %vm740, %v33, 0
  %744 = vmatprep.subr.mxu0 0.0
  %745 = vmatpush1.msra.mxu0 %v34
  %746 = vmatprep.subr.mxu0 0.0
  %747 = vmatpush1.msra.mxu0 %v35
  %748 = vmatprep.subr.mxu0 0.0
  %749 = vmatpush1.msra.mxu0 0.0
  %750 = vmatprep.subr.mxu0 0.0
  %751 = vmatpush1.msra.mxu0 0.0
  %752 = vmatprep.subr.mxu0 0.0
  %753 = vmatpush1.msra.mxu0 0.0
  %754 = vmatprep.subr.mxu0 0.0
  %755 = vmatpush1.msra.mxu0 0.0
  %756 = vmatprep.subr.mxu0 0.0
  %757 = vmatpush1.msra.mxu0 0.0
  %758 = vmatprep.subr.mxu0 0.0
  %759 = vmatpush1.msra.mxu0 0.0
  %760 = vmatprep.subr.mxu0 0.0
  %761 = vmatpush1.msra.mxu0 0.0
  %762 = vmatprep.subr.mxu0 0.0
  %763 = vmatpush1.msra.mxu0 0.0
  %764 = vmatprep.subr.mxu0 0.0
  %765 = vmatpush1.msra.mxu0 0.0
  %766 = vmatprep.subr.mxu0 0.0
  %767 = vmatpush1.msra.mxu0 0.0
  %768 = vmatprep.subr.mxu0 0.0
  %769 = vmatpush1.msra.mxu0 0.0
  %770 = vmatprep.subr.mxu0 0.0
  %771 = vmatpush1.msra.mxu0 0.0
  %772 = vmatprep.subr.mxu0 0.0
  %773 = vmatpush1.msra.mxu0 0.0
  %774 = vmatprep.subr.mxu0 0.0
  %775 = vmatpush1.msra.mxu0 0.0
  %776 = vmatprep.subr.mxu0 0.0
  %777 = vmatpush1.msra.mxu0 0.0
  %778 = vmatprep.subr.mxu0 0.0
  %779 = vmatpush1.msra.mxu0 0.0
  %780 = vmatprep.subr.mxu0 0.0
  %781 = vmatpush1.msra.mxu0 0.0
  %782 = vmatprep.subr.mxu0 0.0
  %783 = vmatpush1.msra.mxu0 0.0
  %784 = vmatprep.subr.mxu0 0.0
  %785 = vmatpush1.msra.mxu0 0.0
  %786 = vmatprep.subr.mxu0 0.0
  %787 = vmatpush1.msra.mxu0 0.0
  %788 = vmatprep.subr.mxu0 0.0
  %789 = vmatpush1.msra.mxu0 0.0
  %790 = vmatprep.subr.mxu0 0.0
  %791 = vmatpush1.msra.mxu0 0.0
  %792 = vmatprep.subr.mxu0 0.0
  %793 = vmatpush1.msra.mxu0 0.0
  %794 = vmatprep.subr.mxu0 0.0
  %795 = vmatpush1.msra.mxu0 0.0
  %796 = vmatprep.subr.mxu0 0.0
  %797 = vmatpush1.msra.mxu0 0.0
  %798 = vmatprep.subr.mxu0 0.0
  %799 = vmatpush1.msra.mxu0 0.0
  %800 = vmatprep.subr.mxu0 0.0
  %801 = vmatpush1.msra.mxu0 0.0
  %802 = vmatprep.subr.mxu0 0.0
  %803 = vmatpush1.msra.mxu0 0.0
  %804 = vmatprep.subr.mxu0 0.0
  %805 = vmatpush1.msra.mxu0 0.0
  %806 = vmatprep.subr.mxu0 0.0
  %807 = vmatpush1.msra.mxu0 0.0
  %808 = vmatprep.mubr.f32.mxu0 0.0
  %809 = vmatmul.mubr.f32.gmra.mrb[0].mxu0 %v742
  %v810 = vpop.f32.mrb[0].mxu0
  %v811 = vadd.f32 %v735, %v810
  %v812 = vpop.f32.mrb[0].mxu0
  %813 = vdwg.mxu0
  %v814 = vld [vmem:[%s5] sm:$0x1]
  %v816 = vlaneseq
  %v817 = vshrl.u32 %v816, 7
  %v818 = vsub.s32 0, %v817
  %v819 = vrot.slane %v814, %v818
  %v821 = vadd.f32 %v811, %v819
  %v822 = vtanh.pop %v821
  %v823 = vld [vmem:[%s6] sm:$0xff]
  %v824 = vld [vmem:[%s6 + $0x8] sm:$0xff]
  %v825 = vld [vmem:[%s6 + $0x10] sm:$0xff]
  %v826 = vld [vmem:[%s6 + $0x18] sm:$0xff]
  %v827 = vld [vmem:[%s2] sm:$0xff]
  %v828 = vld [vmem:[%s7] sm:$0xff]
  %v829 = vld [vmem:[%s7 + $0x8] sm:$0xff]
  %v830 = vld [vmem:[%s7 + $0x10] sm:$0xff]
  %v831 = vld [vmem:[%s7 + $0x18] sm:$0xff]
  %vm832 = vcmask 261120
  %v834 = vsel %vm832, %v827, 0
  %836 = vmatprep.subr.mxu0 0.0
  %837 = vmatpush1.msra.mxu0 %v828
  %838 = vmatprep.subr.mxu0 0.0
  %839 = vmatpush1.msra.mxu0 %v829
  %840 = vmatprep.subr.mxu0 0.0
  %841 = vmatpush1.msra.mxu0 %v830
  %842 = vmatprep.subr.mxu0 0.0
  %843 = vmatpush1.msra.mxu0 %v831
  %844 = vmatprep.subr.mxu0 0.0
  %845 = vmatpush1.msra.mxu0 0.0
  %846 = vmatprep.subr.mxu0 0.0
  %847 = vmatpush1.msra.mxu0 0.0
  %848 = vmatprep.subr.mxu0 0.0
  %849 = vmatpush1.msra.mxu0 0.0
  %850 = vmatprep.subr.mxu0 0.0
  %851 = vmatpush1.msra.mxu0 0.0
  %852 = vmatprep.subr.mxu0 0.0
  %853 = vmatpush1.msra.mxu0 0.0
  %854 = vmatprep.subr.mxu0 0.0
  %855 = vmatpush1.msra.mxu0 0.0
  %856 = vmatprep.subr.mxu0 0.0
  %857 = vmatpush1.msra.mxu0 0.0
  %858 = vmatprep.subr.mxu0 0.0
  %859 = vmatpush1.msra.mxu0 0.0
  %860 = vmatprep.subr.mxu0 0.0
  %861 = vmatpush1.msra.mxu0 0.0
  %862 = vmatprep.subr.mxu0 0.0
  %863 = vmatpush1.msra.mxu0 0.0
  %864 = vmatprep.subr.mxu0 0.0
  %865 = vmatpush1.msra.mxu0 0.0
  %866 = vmatprep.subr.mxu0 0.0
  %867 = vmatpush1.msra.mxu0 0.0
  %868 = vmatprep.subr.mxu0 0.0
  %869 = vmatpush1.msra.mxu0 0.0
  %870 = vmatprep.subr.mxu0 0.0
  %871 = vmatpush1.msra.mxu0 0.0
  %872 = vmatprep.subr.mxu0 0.0
  %873 = vmatpush1.msra.mxu0 0.0
  %874 = vmatprep.subr.mxu0 0.0
  %875 = vmatpush1.msra.mxu0 0.0
  %876 = vmatprep.subr.mxu0 0.0
  %877 = vmatpush1.msra.mxu0 0.0
  %878 = vmatprep.subr.mxu0 0.0
  %879 = vmatpush1.msra.mxu0 0.0
  %880 = vmatprep.subr.mxu0 0.0
  %881 = vmatpush1.msra.mxu0 0.0
  %882 = vmatprep.subr.mxu0 0.0
  %883 = vmatpush1.msra.mxu0 0.0
  %884 = vmatprep.subr.mxu0 0.0
  %885 = vmatpush1.msra.mxu0 0.0
  %886 = vmatprep.subr.mxu0 0.0
  %887 = vmatpush1.msra.mxu0 0.0
  %888 = vmatprep.subr.mxu0 0.0
  %889 = vmatpush1.msra.mxu0 0.0
  %890 = vmatprep.subr.mxu0 0.0
  %891 = vmatpush1.msra.mxu0 0.0
  %892 = vmatprep.subr.mxu0 0.0
  %893 = vmatpush1.msra.mxu0 0.0
  %894 = vmatprep.subr.mxu0 0.0
  %895 = vmatpush1.msra.mxu0 0.0
  %896 = vmatprep.subr.mxu0 0.0
  %897 = vmatpush1.msra.mxu0 0.0
  %898 = vmatprep.subr.mxu0 0.0
  %899 = vmatpush1.msra.mxu0 0.0
  %900 = vmatprep.mubr.f32.mxu0 0.0
  %901 = vmatmul.mubr.f32.gmra.mrb[0].mxu0 %v834
  %v902 = vpop.f32.mrb[0].mxu0
  %v903 = vadd.f32 0.0, %v902
  %v904 = vpop.f32.mrb[0].mxu0
  %905 = vdwg.mxu0
  %v907 = vsel %vm832, %v822, 0
  %909 = vmatprep.subr.mxu0 0.0
  %910 = vmatpush1.msra.mxu0 %v823
  %911 = vmatprep.subr.mxu0 0.0
  %912 = vmatpush1.msra.mxu0 %v824
  %913 = vmatprep.subr.mxu0 0.0
  %914 = vmatpush1.msra.mxu0 %v825
  %915 = vmatprep.subr.mxu0 0.0
  %916 = vmatpush1.msra.mxu0 %v826
  %917 = vmatprep.subr.mxu0 0.0
  %918 = vmatpush1.msra.mxu0 0.0
  %919 = vmatprep.subr.mxu0 0.0
  %920 = vmatpush1.msra.mxu0 0.0
  %921 = vmatprep.subr.mxu0 0.0
  %922 = vmatpush1.msra.mxu0 0.0
  %923 = vmatprep.subr.mxu0 0.0
  %924 = vmatpush1.msra.mxu0 0.0
  %925 = vmatprep.subr.mxu0 0.0
  %926 = vmatpush1.msra.mxu0 0.0
  %927 = vmatprep.subr.mxu0 0.0
  %928 = vmatpush1.msra.mxu0 0.0
  %929 = vmatprep.subr.mxu0 0.0
  %930 = vmatpush1.msra.mxu0 0.0
  %931 = vmatprep.subr.mxu0 0.0
  %932 = vmatpush1.msra.mxu0 0.0
  %933 = vmatprep.subr.mxu0 0.0
  %934 = vmatpush1.msra.mxu0 0.0
  %935 = vmatprep.subr.mxu0 0.0
  %936 = vmatpush1.msra.mxu0 0.0
  %937 = vmatprep.subr.mxu0 0.0
  %938 = vmatpush1.msra.mxu0 0.0
  %939 = vmatprep.subr.mxu0 0.0
  %940 = vmatpush1.msra.mxu0 0.0
  %941 = vmatprep.subr.mxu0 0.0
  %942 = vmatpush1.msra.mxu0 0.0
  %943 = vmatprep.subr.mxu0 0.0
  %944 = vmatpush1.msra.mxu0 0.0
  %945 = vmatprep.subr.mxu0 0.0
  %946 = vmatpush1.msra.mxu0 0.0
  %947 = vmatprep.subr.mxu0 0.0
  %948 = vmatpush1.msra.mxu0 0.0
  %949 = vmatprep.subr.mxu0 0.0
  %950 = vmatpush1.msra.mxu0 0.0
  %951 = vmatprep.subr.mxu0 0.0
  %952 = vmatpush1.msra.mxu0 0.0
  %953 = vmatprep.subr.mxu0 0.0
  %954 = vmatpush1.msra.mxu0 0.0
  %955 = vmatprep.subr.mxu0 0.0
  %956 = vmatpush1.msra.mxu0 0.0
  %957 = vmatprep.subr.mxu0 0.0
  %958 = vmatpush1.msra.mxu0 0.0
  %959 = vmatprep.subr.mxu0 0.0
  %960 = vmatpush1.msra.mxu0 0.0
  %961 = vmatprep.subr.mxu0 0.0
  %962 = vmatpush1.msra.mxu0 0.0
  %963 = vmatprep.subr.mxu0 0.0
  %964 = vmatpush1.msra.mxu0 0.0
  %965 = vmatprep.subr.mxu0 0.0
  %966 = vmatpush1.msra.mxu0 0.0
  %967 = vmatprep.subr.mxu0 0.0
  %968 = vmatpush1.msra.mxu0 0.0
  %969 = vmatprep.subr.mxu0 0.0
  %970 = vmatpush1.msra.mxu0 0.0
  %971 = vmatprep.subr.mxu0 0.0
  %972 = vmatpush1.msra.mxu0 0.0
  %973 = vmatprep.mubr.f32.mxu0 0.0
  %974 = vmatmul.mubr.f32.gmra.mrb[0].mxu0 %v907
  %v975 = vpop.f32.mrb[0].mxu0
  %v976 = vadd.f32 %v903, %v975
  %v977 = vpop.f32.mrb[0].mxu0
  %978 = vdwg.mxu0
  %v979 = vld [vmem:[%s8] sm:$0x1]
  %v981 = vlaneseq
  %v982 = vshrl.u32 %v981, 7
  %v983 = vsub.s32 0, %v982
  %v984 = vrot.slane %v979, %v983
  %v986 = vadd.f32 %v976, %v984
  %v987 = vlaneseq
  %v988 = vand.u32 %v987, 127
  %vm989 = vcmp.ge.s32.totalorder %v988, 32
  %vm990 = vcmp.lt.s32.totalorder %v988, 40
  %vm991 = vmand %vm989, %vm990
  %v992 = vsel %vm991, %v986, -1e+30
  %993 = vmax.xlane.f32.xlu0 %v992
  %v994 = vpop.xlane.xlu0 %993
  %v995 = vsub.f32 %v992, %v994
  %v996 = vmul.f32 %v995, 1.442695
  %v997 = vpow.pop %v996
  %998 = vadd.xlane.f32.xlu0 %v997
  %v999 = vpop.xlane.xlu0 %998
  %v1000 = vrcp.pop %v999
  %v1001 = vmul.f32 %v997, %v1000
  %vm1002 = vcmp.lt.s32.totalorder %v988, 32
  %v1003 = vtanh.pop %v986
  %v1004 = vsel %vm1002, %v1003, %v1001
  %1005 = vst [vmem:[%s9] sm:$0xff] %v1004
  // Predicated region
  $region38: #{shared_actor_forward.1} parent=0 // pred_check
    _
  $region39: #{shared_actor_forward.1} parent=0 // pred_check_branch
    %1007 = sbr.rel (0) target = $region41
  $region40: #{shared_actor_forward.1} parent=0 // pred_region
    _
  $region41: #{shared_actor_forward.1} parent=0 // pred_fallthru
    _
  // Predicated region
  $region42: #{shared_actor_forward.1} parent=0 // pred_check
    _
  $region43: #{shared_actor_forward.1} parent=0 // pred_check_branch
    %1009 = sbr.rel (0) target = $region45
  $region44: #{shared_actor_forward.1} parent=0 // pred_region
    _
  $region45: #{shared_actor_forward.1} parent=0 // pred_fallthru
    _

</llo_original>
